<compile_context>
chip_gen: v6e
topology: v6e:2x2x1
jax: 0.10.0
libtpu: 0.0.40
codegen_flags: <defaults>
</compile_context>

<pallas_src>
import functools

import jax
import jax.numpy as jnp
from jax import lax
from jax.experimental import pallas as pl
from jax.experimental.pallas import tpu as pltpu

LANES = 128
SUBLANES = 8
CHUNK = SUBLANES * LANES       # 1024 elements = one f32 vreg
MAX_BLOCK_CHUNKS = 512         # 512 chunks * 4 KiB = 2 MiB per input block
SUB = 8                        # chunks consumed per inner-loop iteration


def _dsc_kernel(x_ref, t_ref, prod_ref, sum_ref, *, sub):
    """Accumulate per-core vreg partials of sum(x*t) and sum(x+t)."""
    s = pl.program_id(1)  # reduction (arbitrary) axis

    @pl.when(s == 0)
    def _():
        prod_ref[...] = jnp.zeros_like(prod_ref)
        sum_ref[...] = jnp.zeros_like(sum_ref)

    block_chunks = x_ref.shape[0]
    num_full = block_chunks // sub
    rem = block_chunks % sub

    def body(j, carry):
        p, q = carry
        base = pl.multiple_of(j * sub, sub)
        x = x_ref[pl.ds(base, sub), :, :].astype(jnp.float32)
        t = t_ref[pl.ds(base, sub), :, :].astype(jnp.float32)
        p = p + jnp.sum(x * t, axis=0)
        q = q + jnp.sum(x + t, axis=0)
        return p, q

    p = jnp.zeros((SUBLANES, LANES), jnp.float32)
    q = jnp.zeros((SUBLANES, LANES), jnp.float32)
    if num_full > 0:
        p, q = lax.fori_loop(0, num_full, body, (p, q), unroll=True)
    if rem:
        # Static tail (block_chunks not a multiple of `sub`).
        x = x_ref[pl.ds(num_full * sub, rem), :, :].astype(jnp.float32)
        t = t_ref[pl.ds(num_full * sub, rem), :, :].astype(jnp.float32)
        p = p + jnp.sum(x * t, axis=0)
        q = q + jnp.sum(x + t, axis=0)

    prod_ref[...] += p[None, :, :]
    sum_ref[...] += q[None, :, :]


@jax.jit
def dsc_loss(inputs, target):
    smooth = jnp.float32(1e-08)

    x = inputs.reshape(-1)
    t = target.reshape(-1)
    # Non-float (bool / int) masks must be promoted in the wrapper; float
    # inputs stay in their native dtype (bf16 halves HBM traffic) and are
    # upcast to f32 inside the kernel.
    if not jnp.issubdtype(x.dtype, jnp.floating):
        x = x.astype(jnp.float32)
    if not jnp.issubdtype(t.dtype, jnp.floating):
        t = t.astype(jnp.float32)

    n = x.shape[0]
    chunks = (n + CHUNK - 1) // CHUNK
    block_chunks = min(MAX_BLOCK_CHUNKS, chunks)
    total_blocks = (chunks + block_chunks - 1) // block_chunks
    # v7x: split the block range across both TensorCores; harmless on v5e/v6e.
    num_parts = 2 if total_blocks >= 2 else 1
    total_blocks = ((total_blocks + num_parts - 1) // num_parts) * num_parts
    steps = total_blocks // num_parts
    padded_chunks = total_blocks * block_chunks
    padded_n = padded_chunks * CHUNK

    def to_slab(a):
        if padded_n != n:
            # Only for ragged sizes; zeros do not change any of the sums.
            a = jnp.pad(a, (0, padded_n - n))
        return a.reshape(padded_chunks, SUBLANES, LANES)

    x3 = to_slab(x)
    t3 = to_slab(t)

    in_map = lambda c, s: (c * steps + s, 0, 0)
    out_map = lambda c, s: (c, 0, 0)

    prod_part, sum_part = pl.pallas_call(
        functools.partial(_dsc_kernel, sub=SUB),
        out_shape=(
            jax.ShapeDtypeStruct((num_parts, SUBLANES, LANES), jnp.float32),
            jax.ShapeDtypeStruct((num_parts, SUBLANES, LANES), jnp.float32),
        ),
        grid_spec=pltpu.PrefetchScalarGridSpec(
            num_scalar_prefetch=0,
            grid=(num_parts, steps),
            in_specs=[
                pl.BlockSpec((block_chunks, SUBLANES, LANES), in_map),
                pl.BlockSpec((block_chunks, SUBLANES, LANES), in_map),
            ],
            out_specs=[
                pl.BlockSpec((1, SUBLANES, LANES), out_map),
                pl.BlockSpec((1, SUBLANES, LANES), out_map),
            ],
        ),
        compiler_params=pltpu.CompilerParams(
            dimension_semantics=("parallel", "arbitrary")
        ),
    )(x3, t3)

    # Tiny scalar epilogue in XLA on the combined per-core vreg partials.
    intersection = jnp.sum(prod_part)
    total = jnp.sum(sum_part)              # == sum(x) + sum(t)
    dice = (2.0 * intersection + smooth) / (total + smooth)
    return 1.0 - dice


def dsc_loss_ref(inputs, target):
    smooth = 1e-08
    x = inputs.reshape(-1).astype(jnp.float32)
    t = target.reshape(-1).astype(jnp.float32)
    inter = jnp.sum(x * t)
    dice = (2.0 * inter + smooth) / (jnp.sum(t) + jnp.sum(x) + smooth)
    return 1.0 - dice


if __name__ == "__main__":
    key = jax.random.PRNGKey(0)
    k1, k2 = jax.random.split(key)
    # NCHW: batch=2, channels=4, spatial=16x16
    inputs = jax.random.uniform(k1, (2, 4, 16, 16), dtype=jnp.float32)
    target = (jax.random.uniform(k2, (2, 4, 16, 16)) > 0.5).astype(jnp.float32)

    loss = jax.block_until_ready(dsc_loss(inputs, target))
    ref = dsc_loss_ref(inputs, target)
    assert jnp.allclose(loss, ref, rtol=1e-5, atol=1e-6), (loss, ref)
    print("KERNEL_OK")
</pallas_src>

<mosaic_0001>
module attributes {stable_mosaic.version = 11 : i64} {
  func.func @_dsc_kernel(%arg0: i32, %arg1: i32, %arg2: memref<2x8x128xf32, #tpu.memory_space<vmem>>, %arg3: memref<2x8x128xf32, #tpu.memory_space<vmem>>, %arg4: memref<1x8x128xf32, #tpu.memory_space<vmem>>, %arg5: memref<1x8x128xf32, #tpu.memory_space<vmem>>) attributes {dimension_semantics = [#tpu.dimension_semantics<parallel>, #tpu.dimension_semantics<arbitrary>], iteration_bounds = array<i64: 1, 1>, scalar_prefetch = 0 : i64, scratch_operands = 0 : i64, tpu.core_type = #tpu.core_type<tc>, window_params = [{transform_indices = @transform_0, window_bounds = array<i64: 2, 8, 128>}, {transform_indices = @transform_1, window_bounds = array<i64: 2, 8, 128>}, {transform_indices = @transform_2, window_bounds = array<i64: 1, 8, 128>}, {transform_indices = @transform_3, window_bounds = array<i64: 1, 8, 128>}]} {
    %c0_i32 = arith.constant 0 : i32
    %0 = arith.cmpi eq, %arg1, %c0_i32 : i32
    %1 = arith.extui %0 : i1 to i32
    %c0_i32_0 = arith.constant 0 : i32
    %2 = arith.cmpi ne, %1, %c0_i32_0 : i32
    scf.if %2 {
      %cst_21 = arith.constant 0.000000e+00 : f32
      %21 = vector.broadcast %cst_21 : f32 to vector<1x8x128xf32>
      %c0_22 = arith.constant 0 : index
      %c0_23 = arith.constant 0 : index
      %c0_24 = arith.constant 0 : index
      %22 = vector.load %arg4[%c0_22, %c0_23, %c0_24] : memref<1x8x128xf32, #tpu.memory_space<vmem>>, vector<1x8x128xf32>
      tpu.vector_store %arg4[%c0_22, %c0_23, %c0_24], %21 {strides = array<i32>} : memref<1x8x128xf32, #tpu.memory_space<vmem>>, vector<1x8x128xf32>,
      %cst_25 = arith.constant 0.000000e+00 : f32
      %23 = vector.broadcast %cst_25 : f32 to vector<1x8x128xf32>
      %c0_26 = arith.constant 0 : index
      %c0_27 = arith.constant 0 : index
      %c0_28 = arith.constant 0 : index
      %24 = vector.load %arg5[%c0_26, %c0_27, %c0_28] : memref<1x8x128xf32, #tpu.memory_space<vmem>>, vector<1x8x128xf32>
      tpu.vector_store %arg5[%c0_26, %c0_27, %c0_28], %23 {strides = array<i32>} : memref<1x8x128xf32, #tpu.memory_space<vmem>>, vector<1x8x128xf32>,
    } else {
    }
    %cst = arith.constant 0.000000e+00 : f32
    %3 = vector.broadcast %cst : f32 to vector<8x128xf32>
    %cst_1 = arith.constant 0.000000e+00 : f32
    %4 = vector.broadcast %cst_1 : f32 to vector<8x128xf32>
    %c0 = arith.constant 0 : index
    %c0_2 = arith.constant 0 : index
    %c0_3 = arith.constant 0 : index
    %5 = vector.load %arg2[%c0, %c0_2, %c0_3] : memref<2x8x128xf32, #tpu.memory_space<vmem>>, vector<2x8x128xf32>
    %c0_4 = arith.constant 0 : index
    %c0_5 = arith.constant 0 : index
    %c0_6 = arith.constant 0 : index
    %6 = vector.load %arg3[%c0_4, %c0_5, %c0_6] : memref<2x8x128xf32, #tpu.memory_space<vmem>>, vector<2x8x128xf32>
    %7 = arith.mulf %5, %6 : vector<2x8x128xf32>
    %cst_7 = arith.constant dense<0.000000e+00> : vector<8x128xf32>
    %8 = vector.multi_reduction <add>, %7, %cst_7 [0] : vector<2x8x128xf32> to vector<8x128xf32>
    %9 = arith.addf %3, %8 : vector<8x128xf32>
    %10 = arith.addf %5, %6 : vector<2x8x128xf32>
    %cst_8 = arith.constant dense<0.000000e+00> : vector<8x128xf32>
    %11 = vector.multi_reduction <add>, %10, %cst_8 [0] : vector<2x8x128xf32> to vector<8x128xf32>
    %12 = arith.addf %4, %11 : vector<8x128xf32>
    %c0_9 = arith.constant 0 : index
    %c0_10 = arith.constant 0 : index
    %c0_11 = arith.constant 0 : index
    %13 = vector.load %arg4[%c0_9, %c0_10, %c0_11] : memref<1x8x128xf32, #tpu.memory_space<vmem>>, vector<1x8x128xf32>
    %14 = vector.shape_cast %9 : vector<8x128xf32> to vector<1x8x128xf32>
    %15 = arith.addf %13, %14 : vector<1x8x128xf32>
    %c0_12 = arith.constant 0 : index
    %c0_13 = arith.constant 0 : index
    %c0_14 = arith.constant 0 : index
    %16 = vector.load %arg4[%c0_12, %c0_13, %c0_14] : memref<1x8x128xf32, #tpu.memory_space<vmem>>, vector<1x8x128xf32>
    tpu.vector_store %arg4[%c0_12, %c0_13, %c0_14], %15 {strides = array<i32>} : memref<1x8x128xf32, #tpu.memory_space<vmem>>, vector<1x8x128xf32>,
    %c0_15 = arith.constant 0 : index
    %c0_16 = arith.constant 0 : index
    %c0_17 = arith.constant 0 : index
    %17 = vector.load %arg5[%c0_15, %c0_16, %c0_17] : memref<1x8x128xf32, #tpu.memory_space<vmem>>, vector<1x8x128xf32>
    %18 = vector.shape_cast %12 : vector<8x128xf32> to vector<1x8x128xf32>
    %19 = arith.addf %17, %18 : vector<1x8x128xf32>
    %c0_18 = arith.constant 0 : index
    %c0_19 = arith.constant 0 : index
    %c0_20 = arith.constant 0 : index
    %20 = vector.load %arg5[%c0_18, %c0_19, %c0_20] : memref<1x8x128xf32, #tpu.memory_space<vmem>>, vector<1x8x128xf32>
    tpu.vector_store %arg5[%c0_18, %c0_19, %c0_20], %19 {strides = array<i32>} : memref<1x8x128xf32, #tpu.memory_space<vmem>>, vector<1x8x128xf32>,
    return
  }
  func.func @transform_0(%arg0: i32, %arg1: i32) -> (i32, i32, i32) {
    %c1_i32 = arith.constant 1 : i32
    %0 = arith.muli %arg0, %c1_i32 : i32
    %1 = arith.addi %0, %arg1 : i32
    %c0_i32 = arith.constant 0 : i32
    %c0_i32_0 = arith.constant 0 : i32
    %c0_i32_1 = arith.constant 0 : i32
    return %1, %c0_i32, %c0_i32_0 : i32, i32, i32
  }
  func.func @transform_1(%arg0: i32, %arg1: i32) -> (i32, i32, i32) {
    %c1_i32 = arith.constant 1 : i32
    %0 = arith.muli %arg0, %c1_i32 : i32
    %1 = arith.addi %0, %arg1 : i32
    %c0_i32 = arith.constant 0 : i32
    %c0_i32_0 = arith.constant 0 : i32
    %c0_i32_1 = arith.constant 0 : i32
    return %1, %c0_i32, %c0_i32_0 : i32, i32, i32
  }
  func.func @transform_2(%arg0: i32, %arg1: i32) -> (i32, i32, i32) {
    %c0_i32 = arith.constant 0 : i32
    %c0_i32_0 = arith.constant 0 : i32
    %c0_i32_1 = arith.constant 0 : i32
    return %arg0, %c0_i32, %c0_i32_0 : i32, i32, i32
  }
  func.func @transform_3(%arg0: i32, %arg1: i32) -> (i32, i32, i32) {
    %c0_i32 = arith.constant 0 : i32
    %c0_i32_0 = arith.constant 0 : i32
    %c0_i32_1 = arith.constant 0 : i32
    return %arg0, %c0_i32, %c0_i32_0 : i32, i32, i32
  }
}

</mosaic_0001>

<llo_original>
// kernel: dsc_loss.1
$region0: #{dsc_loss.1}
  #allocation0 [shape = 'u32[]', space=smem, size = 0x4, offset = 0x4, fixed_abs, tag = 'smem constant byte address 0x4 - core index']
  #allocation1 [shape = 'u32[144,128]{1,0:T(1,128)}', space=vmem, size = 0x12000, scoped, tag = 'internal scratch']
  %s0 = inlined_call_operand.vmem [shape: f32[2,8,128], index: 0, kind: input, shape index: {}]
  %s1 = inlined_call_operand.vmem [shape: f32[2,8,128], index: 1, kind: input, shape index: {}]
  %s2 = inlined_call_operand.vmem [shape: f32[1,8,128], index: 2, kind: output, shape index: {0}]
  %s3 = inlined_call_operand.vmem [shape: f32[1,8,128], index: 3, kind: output, shape index: {1}]
  %4 = xla_tuple %s2, %s3
  %s5 = sld [smem:[#allocation0]]
  $region30: #{dsc_loss.1} parent=0
    _
  %s7 = ssub.s32 1, %s5
  %s8 = scalar_select 0, %s7, %s5
  // Predicated region
  $region2: #{dsc_loss.1} parent=0 // pred_check
    _
  $region3: #{dsc_loss.1} parent=0 // pred_check_branch
    %10 = sbr.rel (0) target = $region5
  $region4: #{dsc_loss.1} parent=0 // pred_region
    %s11 = sadd.s32 0, 0
    %s12 = smul.u32 2, %s11
    %p13 = scmp.lt.s32.totalorder %s12, 1
    %s14 = scalar_select %p13, %s12, 1
    %s15 = smul.addr %s14, 8
    %s16 = scalar_lea.vmem %s0, %s15
    %s17 = sadd.s32 0, 0
    %s18 = smul.u32 2, %s17
  $region5: #{dsc_loss.1} parent=0 // pred_fallthru
    _
  // Predicated region
  $region6: #{dsc_loss.1} parent=0 // pred_check
    _
  $region7: #{dsc_loss.1} parent=0 // pred_check_branch
    %20 = sbr.rel (0) target = $region9
  $region8: #{dsc_loss.1} parent=0 // pred_region
    %s21 = sadd.s32 0, 0
    %s22 = smul.u32 2, %s21
    %p23 = scmp.lt.s32.totalorder %s22, 1
    %s24 = scalar_select %p23, %s22, 1
    %s25 = smul.addr %s24, 8
    %s26 = scalar_lea.vmem %s1, %s25
    %s27 = sadd.s32 0, 0
    %s28 = smul.u32 2, %s27
  $region9: #{dsc_loss.1} parent=0 // pred_fallthru
    _
  %s29 = sadd.s32 0, 0
  %s30 = smul.u32 2, %s29
  %p31 = scmp.lt.s32.totalorder %s30, 1
  %s32 = scalar_select %p31, %s30, 1
  %s33 = smul.addr %s32, 8
  %s34 = scalar_lea.vmem %s0, %s33
  %s35 = sadd.s32 0, 0
  %s36 = smul.u32 2, %s35
  %p37 = scmp.lt.s32.totalorder %s36, 1
  %s38 = scalar_select %p37, %s36, 1
  %s39 = smul.addr %s38, 8
  %s40 = scalar_lea.vmem %s1, %s39
  %s41 = sadd.s32 0, 0
  %s42 = smul.u32 2, %s41
  %p43 = scmp.lt.s32.totalorder %s42, 1
  %s44 = scalar_select %p43, %s42, 1
  %s45 = smul.addr %s44, 8
  %s46 = scalar_lea.vmem %s0, %s45
  %s47 = sadd.s32 0, 0
  %s48 = smul.u32 2, %s47
  %s49 = sadd.s32 0, 0
  %s50 = smul.u32 2, %s49
  %p51 = scmp.lt.s32.totalorder %s50, 1
  %s52 = scalar_select %p51, %s50, 1
  %s53 = smul.addr %s52, 8
  %s54 = scalar_lea.vmem %s1, %s53
  %s55 = sadd.s32 0, 0
  %s56 = smul.u32 2, %s55
  %p57 = scmp.eq.s32.totalorder 0, 0
  // Predicated region
  $region10: #{dsc_loss.1} parent=0 // pred_check
    %p58 = pneg %p57
  $region11: #{dsc_loss.1} parent=0 // pred_check_branch
    %60 = sbr.rel (%p58) target = $region13
  $region12: #{dsc_loss.1} parent=0 // pred_region
    %61 = vst [vmem:[%s2] sm:$0xff] 0.0
    %62 = vst [vmem:[%s3] sm:$0xff] 0.0
  $region13: #{dsc_loss.1} parent=0 // pred_fallthru
    _
  %v63 = vld [vmem:[%s46] sm:$0xff]
  %v64 = vld [vmem:[%s46 + $0x8] sm:$0xff]
  %v65 = vld [vmem:[%s54] sm:$0xff]
  %v66 = vld [vmem:[%s54 + $0x8] sm:$0xff]
  %v67 = vmul.f32 %v63, %v65
  %v68 = vmul.f32 %v64, %v66
  %v69 = vadd.f32 %v67, %v68
  %v70 = vadd.f32 %v69, 0.0
  %v71 = vadd.f32 %v63, %v65
  %v72 = vadd.f32 %v64, %v66
  %v73 = vadd.f32 %v71, %v72
  %v74 = vadd.f32 %v73, 0.0
  %v75 = vld [vmem:[%s2] sm:$0xff]
  %v76 = vadd.f32 %v75, %v70
  %77 = vst [vmem:[%s2] sm:$0xff] %v76
  %v78 = vld [vmem:[%s3] sm:$0xff]
  %v79 = vadd.f32 %v78, %v74
  %80 = vst [vmem:[%s3] sm:$0xff] %v79
  // Predicated region
  $region14: #{dsc_loss.1} parent=0 // pred_check
    _
  $region15: #{dsc_loss.1} parent=0 // pred_check_branch
    %82 = sbr.rel (0) target = $region17
  $region16: #{dsc_loss.1} parent=0 // pred_region
    _
  $region17: #{dsc_loss.1} parent=0 // pred_fallthru
    _
  // Predicated region
  $region18: #{dsc_loss.1} parent=0 // pred_check
    _
  $region19: #{dsc_loss.1} parent=0 // pred_check_branch
    %84 = sbr.rel (0) target = $region21
  $region20: #{dsc_loss.1} parent=0 // pred_region
    _
  $region21: #{dsc_loss.1} parent=0 // pred_fallthru
    _
  // Predicated region
  $region22: #{dsc_loss.1} parent=0 // pred_check
    _
  $region23: #{dsc_loss.1} parent=0 // pred_check_branch
    %86 = sbr.rel (0) target = $region25
  $region24: #{dsc_loss.1} parent=0 // pred_region
    _
  $region25: #{dsc_loss.1} parent=0 // pred_fallthru
    _
  // Predicated region
  $region26: #{dsc_loss.1} parent=0 // pred_check
    _
  $region27: #{dsc_loss.1} parent=0 // pred_check_branch
    %88 = sbr.rel (0) target = $region29
  $region28: #{dsc_loss.1} parent=0 // pred_region
    _
  $region29: #{dsc_loss.1} parent=0 // pred_fallthru
    _

</llo_original>
